<compile_context>
chip_gen: v7x
topology: tpu7x:2x2x1
jax: 0.10.0
libtpu: 0.0.40
codegen_flags: <defaults>
</compile_context>

<pallas_src>
import functools

import jax
import jax.numpy as jnp
from jax.experimental import pallas as pl
from jax.experimental.pallas import tpu as pltpu


def _lambda_silu_kernel(x_ref, o_ref, *, compute_dtype):
    # func(x) = x * sigmoid(x) = 0.5 * x * (1 + tanh(x/2))  -- single EUP op.
    x = x_ref[...].astype(compute_dtype)
    y = 0.5 * x * (1.0 + jnp.tanh(0.5 * x))
    o_ref[...] = y.astype(o_ref.dtype)


def _tpu_generation():
    try:
        kind = jax.devices()[0].device_kind.lower()
    except Exception:
        return "unknown"
    if "v7" in kind or "7x" in kind:
        return "v7x"
    if "v6" in kind:
        return "v6e"
    if "v5" in kind:
        return "v5e"
    return "unknown"


def _block_config(gen):
    """(target block bytes per buffer, explicit scoped-VMEM limit or None)."""
    if gen == "v7x":
        return 6 * 1024 * 1024, 40 * 1024 * 1024   # 64 MiB physical VMEM
    if gen == "v6e":
        return 3 * 1024 * 1024, 32 * 1024 * 1024   # 128 MiB physical
    if gen == "v5e":
        return 2 * 1024 * 1024, 32 * 1024 * 1024   # default scoped is only 16 MiB
    return 2 * 1024 * 1024, None


def _choose_lane(total):
    """Widest lane count (multiple of 128) that divides `total`; else 128."""
    for lane in (1024, 512, 256, 128):
        if total % lane == 0:
            return lane
    return 128


def _silu_jnp(x):
    xf = x.astype(jnp.float32)
    return (xf * jax.nn.sigmoid(xf)).astype(x.dtype)


def _silu_pallas(flat):
    """Pallas SiLU over a 1-D array whose length is a multiple of 128."""
    total = flat.shape[0]
    dtype = flat.dtype
    itemsize = jnp.dtype(dtype).itemsize

    gen = _tpu_generation()
    target_block_bytes, vmem_limit = _block_config(gen)
    compute_dtype = (jnp.bfloat16
                     if (dtype == jnp.bfloat16 and gen in ("v6e", "v7x"))
                     else jnp.float32)

    lane = _choose_lane(total)
    rows = total // lane
    x2d = jnp.reshape(flat, (rows, lane))

    # Sublane-packing multiple: 8 for f32, 16 for bf16, 32 for 8-bit dtypes.
    mult = max(8, 32 // itemsize)
    bytes_rows = max(mult,
                     (target_block_bytes // (lane * itemsize)) // mult * mult)
    if rows <= mult:
        block_rows = rows                       # block dim == full array dim
    else:
        block_rows = min(bytes_rows, (rows // mult) * mult)
        # Target >= 4 grid steps (>= 2 per TensorCore on v7x) so each core can
        # overlap input prefetch with output writeback; neutral on v5e/v6e.
        if rows >= 4 * mult and pl.cdiv(rows, block_rows) < 4:
            block_rows = min(block_rows,
                             pl.cdiv(pl.cdiv(rows, 4), mult) * mult)

    grid = (pl.cdiv(rows, block_rows),)

    cparams = dict(dimension_semantics=("parallel",))
    if vmem_limit is not None:
        cparams["vmem_limit_bytes"] = vmem_limit

    kernel = functools.partial(_lambda_silu_kernel, compute_dtype=compute_dtype)
    out2d = pl.pallas_call(
        kernel,
        out_shape=jax.ShapeDtypeStruct((rows, lane), dtype),
        grid_spec=pltpu.PrefetchScalarGridSpec(
            num_scalar_prefetch=0,
            grid=grid,
            in_specs=[pl.BlockSpec((block_rows, lane), lambda i: (i, 0))],
            out_specs=pl.BlockSpec((block_rows, lane), lambda i: (i, 0)),
        ),
        compiler_params=pltpu.CompilerParams(**cparams),
        cost_estimate=pl.CostEstimate(
            flops=5 * total,
            transcendentals=total,
            bytes_accessed=2 * total * itemsize),
        # NOTE: pass input_output_aliases={0: 0} here if the caller can donate
        # x (typical in-pipeline activation) to drop the output HBM allocation.
    )(x2d)
    return jnp.reshape(out2d, (total,))


def lambda_forward(x, *, small_bypass_bytes=1 << 20):
    """Apply Lambda(func=SiLU) to a tensor of any shape."""
    if not jnp.issubdtype(x.dtype, jnp.floating):
        raise TypeError(f"Lambda(SiLU) expects a floating dtype, got {x.dtype}")
    total = x.size
    itemsize = jnp.dtype(x.dtype).itemsize

    if total * itemsize < small_bypass_bytes or total < 128:
        # Tiny tensors: let XLA fuse the activation with its neighbours; a
        # standalone pallas_call would be pure fixed overhead.
        return _silu_jnp(x)

    flat = jnp.reshape(x, (total,))
    prefix = (total // 128) * 128
    tail = total - prefix
    if tail == 0:
        out_flat = _silu_pallas(flat)
    else:
        # Ragged size: Pallas over the 128-divisible prefix, <128-element tail
        # in plain jnp.  Avoids the old full-tensor pad + slice (2 extra HBM
        # passes); only the trailing concat of the prefix output remains.
        out_flat = jnp.concatenate(
            [_silu_pallas(flat[:prefix]), _silu_jnp(flat[prefix:])])
    return jnp.reshape(out_flat, x.shape)


def _reference(x):
    xf = x.astype(jnp.float32)
    return (xf * jax.nn.sigmoid(xf)).astype(x.dtype)


if __name__ == "__main__":
    key = jax.random.PRNGKey(0)

    # Small NCHW input consistent with a conv-style pipeline: (N, C, H, W).
    # Default path: small-tensor bypass (fused jnp).
    x = jax.random.normal(key, (2, 4, 16, 16), dtype=jnp.float32)
    out = jax.block_until_ready(lambda_forward(x))
    ref = _reference(x)
    assert out.shape == x.shape and out.dtype == x.dtype
    assert jnp.allclose(out, ref, atol=2e-5, rtol=2e-5), "mismatch (bypass)"

    # Same small shape, but force the Pallas kernel path.
    out_p = jax.block_until_ready(lambda_forward(x, small_bypass_bytes=0))
    assert out_p.shape == x.shape and out_p.dtype == x.dtype
    assert jnp.allclose(out_p, ref, atol=2e-5, rtol=2e-5), "mismatch (pallas)"

    # Non-128-divisible shape: exercises Pallas prefix + jnp tail path.
    x2 = jax.random.normal(jax.random.PRNGKey(1), (3, 5, 7, 11),
                           dtype=jnp.float32)
    out2 = jax.block_until_ready(lambda_forward(x2, small_bypass_bytes=0))
    ref2 = _reference(x2)
    assert out2.shape == x2.shape
    assert jnp.allclose(out2, ref2, atol=2e-5, rtol=2e-5), "mismatch (ragged)"

    # bf16 input: compute dtype gated by TPU generation inside the kernel.
    x3 = jax.random.normal(jax.random.PRNGKey(2), (2, 8, 32, 32),
                           dtype=jnp.bfloat16)
    out3 = jax.block_until_ready(lambda_forward(x3, small_bypass_bytes=0))
    ref3 = _reference(x3)
    assert out3.shape == x3.shape and out3.dtype == jnp.bfloat16
    assert jnp.allclose(out3.astype(jnp.float32), ref3.astype(jnp.float32),
                        atol=4e-2, rtol=4e-2), "mismatch (bf16)"

    print("KERNEL_OK")
</pallas_src>

<mosaic_0001>
module attributes {stable_mosaic.version = 11 : i64} {
  func.func @_lambda_silu_kernel(%arg0: i32, %arg1: memref<2x1024xf32, #tpu.memory_space<vmem>>, %arg2: memref<2x1024xf32, #tpu.memory_space<vmem>>) attributes {dimension_semantics = [#tpu.dimension_semantics<parallel>], iteration_bounds = array<i64: 1>, scalar_prefetch = 0 : i64, scratch_operands = 0 : i64, tpu.core_type = #tpu.core_type<tc>, window_params = [{transform_indices = @transform_0, window_bounds = array<i64: 2, 1024>}, {transform_indices = @transform_1, window_bounds = array<i64: 2, 1024>}]} {
    %c0 = arith.constant 0 : index
    %c0_0 = arith.constant 0 : index
    %0 = vector.load %arg1[%c0, %c0_0] : memref<2x1024xf32, #tpu.memory_space<vmem>>, vector<2x1024xf32>
    %cst = arith.constant 5.000000e-01 : f32
    %1 = vector.broadcast %cst : f32 to vector<2x1024xf32>
    %2 = arith.mulf %1, %0 : vector<2x1024xf32>
    %cst_1 = arith.constant 5.000000e-01 : f32
    %3 = vector.broadcast %cst_1 : f32 to vector<2x1024xf32>
    %4 = arith.mulf %3, %0 : vector<2x1024xf32>
    %5 = math.tanh %4 : vector<2x1024xf32>
    %cst_2 = arith.constant 1.000000e+00 : f32
    %6 = vector.broadcast %cst_2 : f32 to vector<2x1024xf32>
    %7 = arith.addf %6, %5 : vector<2x1024xf32>
    %8 = arith.mulf %2, %7 : vector<2x1024xf32>
    %c0_3 = arith.constant 0 : index
    %c0_4 = arith.constant 0 : index
    %9 = vector.load %arg2[%c0_3, %c0_4] : memref<2x1024xf32, #tpu.memory_space<vmem>>, vector<2x1024xf32>
    tpu.vector_store %arg2[%c0_3, %c0_4], %8 {strides = array<i32>} : memref<2x1024xf32, #tpu.memory_space<vmem>>, vector<2x1024xf32>,
    return
  }
  func.func @transform_0(%arg0: i32) -> (i32, i32) {
    %c0_i32 = arith.constant 0 : i32
    %c0_i32_0 = arith.constant 0 : i32
    return %arg0, %c0_i32 : i32, i32
  }
  func.func @transform_1(%arg0: i32) -> (i32, i32) {
    %c0_i32 = arith.constant 0 : i32
    %c0_i32_0 = arith.constant 0 : i32
    return %arg0, %c0_i32 : i32, i32
  }
}

</mosaic_0001>

<llo_original>
// kernel: tpu_custom_call.1
$region0: #{tpu_custom_call.1}
  #allocation0 [shape = 'u32[]', space=smem, size = 0x4, offset = 0x4, fixed_abs, tag = 'smem constant byte address 0x4 - core index']
  #allocation1 [shape = 'u32[144,128]{1,0:T(1,128)}', space=vmem, size = 0x12000, scoped, tag = 'internal scratch']
  %s0 = inlined_call_operand.hbm [shape: f32[2,1024], index: 0, kind: input, shape index: {}]
  %s1 = inlined_call_operand.hbm [shape: f32[2,1024], index: 1, kind: output, shape index: {}]
  %s2 = sld [smem:[#allocation0]]
  $region18: #{tpu_custom_call.1} parent=0
    _
  %s4 = ssub.s32 1, %s2
  %s5 = scalar_select 0, %s4, %s2
  $region1: #{tpu_custom_call.1} parent=0
    #allocation2 [shape = 'u8[8192]{0}', space=vmem, size = 0x2000, scoped, tag = 'input window, operand 0, single buffered']
    #allocation3 [shape = 's32[1]{0}', space=sflag, size = 0x4, scoped, tag = 'scoped memory for tpu_custom_call.1']
    #allocation4 [shape = 's32[1]{0}', space=sflag, size = 0x4, scoped, tag = 'scoped memory for tpu_custom_call.1']
    #allocation5 [shape = 'u8[8192]{0}', space=vmem, size = 0x2000, scoped, tag = 'output window, operand 0, single buffered']
    %6 = vsyncpa [#allocation3], 0
    %7 = vsyncpa [#allocation4], 0
    // Predicated region
    $region2: #{tpu_custom_call.1} parent=1 // pred_check
      _
    $region3: #{tpu_custom_call.1} parent=1 // pred_check_branch
      %9 = sbr.rel (0) target = $region5
    $region4: #{tpu_custom_call.1} parent=1 // pred_region
      %s11 = ssub.s32 256, 256
      %12 = vsyncadd [#allocation3], %s11
      %s14 = sshll.u32 [#allocation2], 4
      %s15 = int_to_ptr.vmem [resolvable:$true] %s14
      %17 = dma.hbm_to_vmem [thread:$0]  %s0, 256, %s15, [#allocation3]
    $region5: #{tpu_custom_call.1} parent=1 // pred_fallthru
      _
    // Predicated region
    $region6: #{tpu_custom_call.1} parent=1 // pred_check
      _
    $region7: #{tpu_custom_call.1} parent=1 // pred_check_branch
      %19 = sbr.rel (0) target = $region9
    $region8: #{tpu_custom_call.1} parent=1 // pred_region
      %20 = dma.done [#allocation3], 256
    $region9: #{tpu_custom_call.1} parent=1 // pred_fallthru
      _
    %v21 = vld [vmem:[#allocation2] sm:$0xff]
    %v22 = vld [vmem:[#allocation2 + $0x8] sm:$0xff]
    %v23 = vmul.f32 %v21, 0.5
    %v24 = vmul.f32 %v22, 0.5
    %v25 = vtanh.pop %v23
    %v26 = vtanh.pop %v24
    %v27 = vadd.f32 %v25, 1.0
    %v28 = vadd.f32 %v26, 1.0
    %v29 = vmul.f32 %v23, %v27
    %v30 = vmul.f32 %v24, %v28
    %31 = vst [vmem:[#allocation5] sm:$0xff] %v29
    %32 = vst [vmem:[#allocation5 + $0x8] sm:$0xff] %v30
    // Predicated region
    $region10: #{tpu_custom_call.1} parent=1 // pred_check
      _
    $region11: #{tpu_custom_call.1} parent=1 // pred_check_branch
      %34 = sbr.rel (0) target = $region13
    $region12: #{tpu_custom_call.1} parent=1 // pred_region
      %s36 = ssub.s32 256, 256
      %37 = vsyncadd [#allocation4], %s36
      %s39 = sshll.u32 [#allocation5], 4
      %s40 = int_to_ptr.vmem [resolvable:$true] %s39
      %42 = dma.vmem_to_hbm [thread:$0]  %s40, 256, %s1, [#allocation4]
    $region13: #{tpu_custom_call.1} parent=1 // pred_fallthru
      _
    // Predicated region
    $region14: #{tpu_custom_call.1} parent=1 // pred_check
      _
    $region15: #{tpu_custom_call.1} parent=1 // pred_check_branch
      %44 = sbr.rel (0) target = $region17
    $region16: #{tpu_custom_call.1} parent=1 // pred_region
      %45 = dma.done [#allocation4], 256
    $region17: #{tpu_custom_call.1} parent=1 // pred_fallthru
      _
    %46 = vsyncpa [#allocation3], 1
    %47 = vsyncpa [#allocation4], 1

</llo_original>
